<compile_context>
chip_gen: v7x
topology: tpu7x:2x2x1
jax: 0.10.0
libtpu: 0.0.40
codegen_flags: <defaults>
</compile_context>

<pallas_src>
import functools

import jax
import jax.numpy as jnp
from jax.experimental import pallas as pl
from jax.experimental.pallas import tpu as pltpu

LANE = 128
SUBLANE = 8


def _pick_tile(dim, cap, align):
    """Largest tile <= cap that is a multiple of `align` and divides `dim`;
    falls back to the full dim (always a legal block size)."""
    if dim <= cap:
        return dim
    t = (cap // align) * align
    while t >= align:
        if dim % t == 0:
            return t
        t -= align
    return dim


# ---------------------------------------------------------------------------
# Kernel 1: XW_stack[r*N + m, :] = (H @ W[r])[m, :]        (lane-dense, bf16)
# ---------------------------------------------------------------------------
def _xw_kernel(x_ref, w_ref, o_ref):
    o_ref[...] = jnp.dot(
        x_ref[...], w_ref[...],
        preferred_element_type=jnp.float32).astype(o_ref.dtype)


def _xw_stack(x, w, *, tm_cap=512):
    """x: [N, Dp] bf16, w: [R, Dp, Dp] bf16 -> [R*N, Dp] bf16 (relation-major)."""
    N, Dp = x.shape
    R = w.shape[0]
    tm = _pick_tile(N, tm_cap, SUBLANE)
    nb = N // tm

    flops = 2 * R * N * Dp * Dp
    bytes_accessed = R * N * Dp * 2 + R * Dp * Dp * 2 + R * N * Dp * 2

    return pl.pallas_call(
        _xw_kernel,
        out_shape=jax.ShapeDtypeStruct((R * N, Dp), jnp.bfloat16),
        grid_spec=pltpu.PrefetchScalarGridSpec(
            num_scalar_prefetch=0,
            grid=(R, nb),
            in_specs=[
                pl.BlockSpec((tm, Dp), lambda r, j: (j, 0)),
                pl.BlockSpec((None, Dp, Dp), lambda r, j: (r, 0, 0)),
            ],
            out_specs=pl.BlockSpec((tm, Dp), lambda r, j: (r * nb + j, 0)),
        ),
        compiler_params=pltpu.CompilerParams(
            dimension_semantics=("parallel", "parallel"),
        ),
        cost_estimate=pl.CostEstimate(
            flops=int(flops), transcendentals=0,
            bytes_accessed=int(bytes_accessed)),
    )(x, w)


# ---------------------------------------------------------------------------
# Kernel 2: out = relu?(A_cat @ XW_stack + bias)   (single K = R*N contraction)
# ---------------------------------------------------------------------------
def _spmm_bias_kernel(a_ref, xw_ref, b_ref, o_ref, acc_ref, *, apply_relu):
    k = pl.program_id(1)

    @pl.when(k == 0)
    def _():
        acc_ref[...] = jnp.broadcast_to(
            b_ref[...], acc_ref.shape).astype(jnp.float32)

    acc_ref[...] += jnp.dot(a_ref[...], xw_ref[...],
                            preferred_element_type=jnp.float32)

    @pl.when(k == pl.num_programs(1) - 1)
    def _():
        res = acc_ref[...]
        if apply_relu:
            res = jnp.maximum(res, 0.0)
        o_ref[...] = res.astype(o_ref.dtype)


def _relational_aggregate(a_cat, xw, bias, *, apply_relu=False,
                          tm_cap=512, tk_cap=1024):
    """a_cat: [N, K] bf16, xw: [K, Dp] bf16, bias: [1, Dp] f32 -> [N, Dp] bf16."""
    N, K = a_cat.shape
    Dp = xw.shape[1]
    tm = _pick_tile(N, tm_cap, SUBLANE)
    tk = _pick_tile(K, tk_cap, LANE)
    nbi, nbk = N // tm, K // tk

    # VMEM per grid step: double-buffered inputs/output + f32 accumulator.
    per_step = (2 * (tm * tk * 2 + tk * Dp * 2 + Dp * 4 + tm * Dp * 2)
                + tm * Dp * 4)
    vmem_limit = int(min(64 << 20, max(8 << 20, 3 * per_step)))

    flops = 2 * N * K * Dp
    bytes_accessed = N * K * 2 + K * Dp * 2 * nbi + N * Dp * 2

    # TODO(synk): real graphs are sparse (A is COO in the reference); a
    # per-(row-tile, k-tile) block-nonzero mask via scalar prefetch + manual
    # DMA would skip empty adjacency blocks entirely.
    return pl.pallas_call(
        functools.partial(_spmm_bias_kernel, apply_relu=apply_relu),
        out_shape=jax.ShapeDtypeStruct((N, Dp), jnp.bfloat16),
        grid_spec=pltpu.PrefetchScalarGridSpec(
            num_scalar_prefetch=0,
            grid=(nbi, nbk),
            in_specs=[
                pl.BlockSpec((tm, tk), lambda i, k: (i, k)),
                pl.BlockSpec((tk, Dp), lambda i, k: (k, 0)),
                pl.BlockSpec((1, Dp), lambda i, k: (0, 0)),
            ],
            out_specs=pl.BlockSpec((tm, Dp), lambda i, k: (i, 0)),
            scratch_shapes=[pltpu.VMEM((tm, Dp), jnp.float32)],
        ),
        compiler_params=pltpu.CompilerParams(
            dimension_semantics=("parallel", "arbitrary"),
            vmem_limit_bytes=vmem_limit,
        ),
        cost_estimate=pl.CostEstimate(
            flops=int(flops), transcendentals=0,
            bytes_accessed=int(bytes_accessed)),
    )(a_cat, xw, bias)


def navi_layer(h, a_cat, w_pad, b_pad, *, apply_relu=False):
    """One navi layer: relu?(sum_r A[r] @ (H @ W[r]) + b), lane-dense space.

    h:     [N, Dp]     bf16 (D zero-padded to Dp)
    a_cat: [N, R*N]    bf16, A_cat[n, r*N + m] = A[r, n, m]
    w_pad: [R, Dp, Dp] bf16
    b_pad: [1, Dp]     f32
    """
    xw = _xw_stack(h, w_pad)                                   # [R*N, Dp]
    return _relational_aggregate(a_cat, xw, b_pad,
                                 apply_relu=apply_relu)        # [N, Dp]


def _forward_impl(X, adjacencies, params):
    """X: [N, D] f32, adjacencies: dense [R, N, N] f32 -> [N, D] f32."""
    N, D = X.shape
    R = adjacencies.shape[0]
    Dp = params[0][0].shape[-1]
    num_layers = len(params)

    # One-time rearrangement (constant across layers): fold relations into
    # the contraction dim.  A_cat[n, r*N + m] = A[r, n, m].
    a_cat = jnp.transpose(adjacencies, (1, 0, 2)).reshape(N, R * N)
    a_cat = a_cat.astype(jnp.bfloat16)

    # Lane-dense, zero-padded node features.
    h = jnp.zeros((N, Dp), jnp.float32).at[:, :D].set(X).astype(jnp.bfloat16)

    for l, (w_pad, b_pad) in enumerate(params):
        # TODO(synk): concrete Navi_* subclasses may use a different
        # inter-layer nonlinearity; ReLU assumed here (fused into the kernel).
        h = navi_layer(h, a_cat, w_pad, b_pad,
                       apply_relu=(l < num_layers - 1))
    return h[:, :D].astype(jnp.float32)


class NaviManagerPallas:
    """JAX/Pallas re-implementation of NaviManager's forward pass.

    args mirrors the PyTorch dict: 'number relations', 'dimension',
    'use bias', 'navi layers'.  initial=True => dropout = 0 (SparseDropout is
    the identity), matching the reference at inference/initial time.
    """

    def __init__(self, args, initial=True, key=None):
        if key is None:
            key = jax.random.PRNGKey(0)
        self.num_rel = args['number relations']
        self.dim = args['dimension']
        self.use_bias = args['use bias']
        self.num_layers = len(args['navi layers'])
        self.initial = initial
        self.dropout = 0.0  # initial / eval => SparseDropout is identity
        self.dim_pad = max(LANE, ((self.dim + LANE - 1) // LANE) * LANE)

        # Deterministic glorot-style init; params stored zero-padded to Dp
        # (padding is exact: padded rows/cols of W and b are zero).
        self.params = []
        for _ in range(self.num_layers):
            key, wk = jax.random.split(key)
            scale = 1.0 / jnp.sqrt(jnp.float32(self.dim))
            w = scale * jax.random.normal(
                wk, (self.num_rel, self.dim, self.dim), dtype=jnp.float32)
            w_pad = jnp.zeros((self.num_rel, self.dim_pad, self.dim_pad),
                              jnp.float32).at[:, :self.dim, :self.dim].set(w)
            b_pad = jnp.zeros((1, self.dim_pad), jnp.float32)  # bias init = 0
            self.params.append((w_pad.astype(jnp.bfloat16), b_pad))

        self._forward = jax.jit(_forward_impl)

    def forward(self, X, adjacencies):
        return self._forward(X, adjacencies, self.params)

    __call__ = forward


def _reference_forward(mgr, X, adj):
    """Pure-jnp reference with the same bf16-input / f32-accumulate precision."""
    N, D = X.shape
    Dp = mgr.dim_pad
    a = adj.astype(jnp.bfloat16)
    h = jnp.zeros((N, Dp), jnp.float32).at[:, :D].set(X).astype(jnp.bfloat16)
    for l, (w_pad, b_pad) in enumerate(mgr.params):
        xw = jnp.einsum('nd,rde->rne', h, w_pad,
                        preferred_element_type=jnp.float32).astype(jnp.bfloat16)
        out = jnp.einsum('rnm,rme->ne', a, xw,
                         preferred_element_type=jnp.float32) + b_pad
        h = out.astype(jnp.bfloat16)
        if l < mgr.num_layers - 1:
            h = jax.nn.relu(h)
    return h[:, :D].astype(jnp.float32)


if __name__ == "__main__":
    key = jax.random.PRNGKey(0)
    N, D, R = 64, 32, 4  # small shapes: 64 nodes, dim 32, 4 relations

    args = {
        'number relations': R,
        'dimension': D,
        'use bias': True,
        'navi layers': ['contextual', 'contextual'],
        'cuda': False,
    }
    mgr = NaviManagerPallas(args, initial=True, key=jax.random.PRNGKey(1))

    kx, ka = jax.random.split(key)
    X = jax.random.normal(kx, (N, D), dtype=jnp.float32)
    # Sparse-ish dense adjacency stack (random mask, roughly row-normalized).
    adj_raw = jax.random.uniform(ka, (R, N, N), dtype=jnp.float32)
    adj = jnp.where(adj_raw > 0.8, adj_raw, 0.0) / jnp.float32(N)

    out = mgr(X, adj)
    jax.block_until_ready(out)

    ref = _reference_forward(mgr, X, adj)
    assert out.shape == (N, D)
    max_err = float(jnp.max(jnp.abs(out - ref)))
    assert jnp.allclose(out, ref, atol=1e-3, rtol=2e-2), (
        f"mismatch vs reference (max abs err {max_err})")

    print("KERNEL_OK")
</pallas_src>

<mosaic_0001>
module attributes {stable_mosaic.version = 11 : i64} {
  func.func @_spmm_bias_kernel(%arg0: i32, %arg1: i32, %arg2: memref<64x256xbf16, #tpu.memory_space<vmem>>, %arg3: memref<256x128xbf16, #tpu.memory_space<vmem>>, %arg4: memref<1x128xf32, #tpu.memory_space<vmem>>, %arg5: memref<64x128xbf16, #tpu.memory_space<vmem>>, %arg6: memref<64x128xf32, #tpu.memory_space<vmem>>) attributes {dimension_semantics = [#tpu.dimension_semantics<parallel>, #tpu.dimension_semantics<arbitrary>], iteration_bounds = array<i64: 1, 1>, scalar_prefetch = 0 : i64, scratch_operands = 1 : i64, tpu.core_type = #tpu.core_type<tc>, window_params = [{transform_indices = @transform_0, window_bounds = array<i64: 64, 256>}, {transform_indices = @transform_1, window_bounds = array<i64: 256, 128>}, {pipeline_mode = #tpu.pipeline_mode<synchronous>, transform_indices = @transform_2, window_bounds = array<i64: 1, 128>}, {transform_indices = @transform_3, window_bounds = array<i64: 64, 128>}]} {
    %c0_i32 = arith.constant 0 : i32
    %0 = arith.cmpi eq, %arg1, %c0_i32 : i32
    %1 = arith.extui %0 : i1 to i32
    %c0_i32_0 = arith.constant 0 : i32
    %2 = arith.cmpi ne, %1, %c0_i32_0 : i32
    scf.if %2 {
      %c0_10 = arith.constant 0 : index
      %c0_11 = arith.constant 0 : index
      %12 = vector.load %arg4[%c0_10, %c0_11] : memref<1x128xf32, #tpu.memory_space<vmem>>, vector<1x128xf32>
      %13 = vector.shape_cast %12 : vector<1x128xf32> to vector<1x128xf32>
      %14 = vector.broadcast %13 : vector<1x128xf32> to vector<64x128xf32>
      %c0_12 = arith.constant 0 : index
      %c0_13 = arith.constant 0 : index
      %15 = vector.load %arg6[%c0_12, %c0_13] : memref<64x128xf32, #tpu.memory_space<vmem>>, vector<64x128xf32>
      tpu.vector_store %arg6[%c0_12, %c0_13], %14 {strides = array<i32>} : memref<64x128xf32, #tpu.memory_space<vmem>>, vector<64x128xf32>,
    } else {
    }
    %c0 = arith.constant 0 : index
    %c0_1 = arith.constant 0 : index
    %3 = vector.load %arg6[%c0, %c0_1] : memref<64x128xf32, #tpu.memory_space<vmem>>, vector<64x128xf32>
    %c0_2 = arith.constant 0 : index
    %c0_3 = arith.constant 0 : index
    %4 = vector.load %arg2[%c0_2, %c0_3] : memref<64x256xbf16, #tpu.memory_space<vmem>>, vector<64x256xbf16>
    %c0_4 = arith.constant 0 : index
    %c0_5 = arith.constant 0 : index
    %5 = vector.load %arg3[%c0_4, %c0_5] : memref<256x128xbf16, #tpu.memory_space<vmem>>, vector<256x128xbf16>
    %cst = arith.constant dense<0.000000e+00> : vector<64x128xf32>
    %6 = tpu.matmul %4, %5, %cst {dimension_numbers = #tpu.dot_dimension_numbers<[1], [0], [0], [1], [0, 0, 1, 1], [], []>} : vector<64x256xbf16>, vector<256x128xbf16>, vector<64x128xf32> -> vector<64x128xf32>
    %7 = arith.addf %3, %6 : vector<64x128xf32>
    %c0_6 = arith.constant 0 : index
    %c0_7 = arith.constant 0 : index
    %8 = vector.load %arg6[%c0_6, %c0_7] : memref<64x128xf32, #tpu.memory_space<vmem>>, vector<64x128xf32>
    tpu.vector_store %arg6[%c0_6, %c0_7], %7 {strides = array<i32>} : memref<64x128xf32, #tpu.memory_space<vmem>>, vector<64x128xf32>,
    %c0_i32_8 = arith.constant 0 : i32
    %9 = arith.cmpi eq, %arg1, %c0_i32_8 : i32
    %10 = arith.extui %9 : i1 to i32
    %c0_i32_9 = arith.constant 0 : i32
    %11 = arith.cmpi ne, %10, %c0_i32_9 : i32
    scf.if %11 {
      %c0_10 = arith.constant 0 : index
      %c0_11 = arith.constant 0 : index
      %12 = vector.load %arg6[%c0_10, %c0_11] : memref<64x128xf32, #tpu.memory_space<vmem>>, vector<64x128xf32>
      %13 = arith.truncf %12 : vector<64x128xf32> to vector<64x128xbf16>
      %c0_12 = arith.constant 0 : index
      %c0_13 = arith.constant 0 : index
      %14 = vector.load %arg5[%c0_12, %c0_13] : memref<64x128xbf16, #tpu.memory_space<vmem>>, vector<64x128xbf16>
      tpu.vector_store %arg5[%c0_12, %c0_13], %13 {strides = array<i32>} : memref<64x128xbf16, #tpu.memory_space<vmem>>, vector<64x128xbf16>,
    } else {
    }
    return
  }
  func.func @transform_0(%arg0: i32, %arg1: i32) -> (i32, i32) {
    %c0_i32 = arith.constant 0 : i32
    return %arg0, %arg1 : i32, i32
  }
  func.func @transform_1(%arg0: i32, %arg1: i32) -> (i32, i32) {
    %c0_i32 = arith.constant 0 : i32
    %c0_i32_0 = arith.constant 0 : i32
    return %arg1, %c0_i32 : i32, i32
  }
  func.func @transform_2(%arg0: i32, %arg1: i32) -> (i32, i32) {
    %c0_i32 = arith.constant 0 : i32
    %c0_i32_0 = arith.constant 0 : i32
    %c0_i32_1 = arith.constant 0 : i32
    return %c0_i32, %c0_i32_0 : i32, i32
  }
  func.func @transform_3(%arg0: i32, %arg1: i32) -> (i32, i32) {
    %c0_i32 = arith.constant 0 : i32
    %c0_i32_0 = arith.constant 0 : i32
    return %arg0, %c0_i32 : i32, i32
  }
}

module attributes {stable_mosaic.version = 11 : i64} {
  func.func @_spmm_bias_kernel(%arg0: i32, %arg1: i32, %arg2: memref<64x256xbf16, #tpu.memory_space<vmem>>, %arg3: memref<256x128xbf16, #tpu.memory_space<vmem>>, %arg4: memref<1x128xf32, #tpu.memory_space<vmem>>, %arg5: memref<64x128xbf16, #tpu.memory_space<vmem>>, %arg6: memref<64x128xf32, #tpu.memory_space<vmem>>) attributes {dimension_semantics = [#tpu.dimension_semantics<parallel>, #tpu.dimension_semantics<arbitrary>], iteration_bounds = array<i64: 1, 1>, scalar_prefetch = 0 : i64, scratch_operands = 1 : i64, tpu.core_type = #tpu.core_type<tc>, window_params = [{transform_indices = @transform_0, window_bounds = array<i64: 64, 256>}, {transform_indices = @transform_1, window_bounds = array<i64: 256, 128>}, {pipeline_mode = #tpu.pipeline_mode<synchronous>, transform_indices = @transform_2, window_bounds = array<i64: 1, 128>}, {transform_indices = @transform_3, window_bounds = array<i64: 64, 128>}]} {
    %c0_i32 = arith.constant 0 : i32
    %0 = arith.cmpi eq, %arg1, %c0_i32 : i32
    %1 = arith.extui %0 : i1 to i32
    %c0_i32_0 = arith.constant 0 : i32
    %2 = arith.cmpi ne, %1, %c0_i32_0 : i32
    scf.if %2 {
      %c0_10 = arith.constant 0 : index
      %c0_11 = arith.constant 0 : index
      %12 = vector.load %arg4[%c0_10, %c0_11] : memref<1x128xf32, #tpu.memory_space<vmem>>, vector<1x128xf32>
      %13 = vector.shape_cast %12 : vector<1x128xf32> to vector<1x128xf32>
      %14 = vector.broadcast %13 : vector<1x128xf32> to vector<64x128xf32>
      %c0_12 = arith.constant 0 : index
      %c0_13 = arith.constant 0 : index
      %15 = vector.load %arg6[%c0_12, %c0_13] : memref<64x128xf32, #tpu.memory_space<vmem>>, vector<64x128xf32>
      tpu.vector_store %arg6[%c0_12, %c0_13], %14 {strides = array<i32>} : memref<64x128xf32, #tpu.memory_space<vmem>>, vector<64x128xf32>,
    } else {
    }
    %c0 = arith.constant 0 : index
    %c0_1 = arith.constant 0 : index
    %3 = vector.load %arg6[%c0, %c0_1] : memref<64x128xf32, #tpu.memory_space<vmem>>, vector<64x128xf32>
    %c0_2 = arith.constant 0 : index
    %c0_3 = arith.constant 0 : index
    %4 = vector.load %arg2[%c0_2, %c0_3] : memref<64x256xbf16, #tpu.memory_space<vmem>>, vector<64x256xbf16>
    %c0_4 = arith.constant 0 : index
    %c0_5 = arith.constant 0 : index
    %5 = vector.load %arg3[%c0_4, %c0_5] : memref<256x128xbf16, #tpu.memory_space<vmem>>, vector<256x128xbf16>
    %cst = arith.constant dense<0.000000e+00> : vector<64x128xf32>
    %6 = tpu.matmul %4, %5, %cst {dimension_numbers = #tpu.dot_dimension_numbers<[1], [0], [0], [1], [0, 0, 1, 1], [], []>} : vector<64x256xbf16>, vector<256x128xbf16>, vector<64x128xf32> -> vector<64x128xf32>
    %7 = arith.addf %3, %6 : vector<64x128xf32>
    %c0_6 = arith.constant 0 : index
    %c0_7 = arith.constant 0 : index
    %8 = vector.load %arg6[%c0_6, %c0_7] : memref<64x128xf32, #tpu.memory_space<vmem>>, vector<64x128xf32>
    tpu.vector_store %arg6[%c0_6, %c0_7], %7 {strides = array<i32>} : memref<64x128xf32, #tpu.memory_space<vmem>>, vector<64x128xf32>,
    %c0_i32_8 = arith.constant 0 : i32
    %9 = arith.cmpi eq, %arg1, %c0_i32_8 : i32
    %10 = arith.extui %9 : i1 to i32
    %c0_i32_9 = arith.constant 0 : i32
    %11 = arith.cmpi ne, %10, %c0_i32_9 : i32
    scf.if %11 {
      %c0_10 = arith.constant 0 : index
      %c0_11 = arith.constant 0 : index
      %12 = vector.load %arg6[%c0_10, %c0_11] : memref<64x128xf32, #tpu.memory_space<vmem>>, vector<64x128xf32>
      %cst_12 = arith.constant 0.000000e+00 : f32
      %13 = vector.broadcast %cst_12 : f32 to vector<64x128xf32>
      %14 = arith.maximumf %12, %13 : vector<64x128xf32>
      %15 = arith.truncf %14 : vector<64x128xf32> to vector<64x128xbf16>
      %c0_13 = arith.constant 0 : index
      %c0_14 = arith.constant 0 : index
      %16 = vector.load %arg5[%c0_13, %c0_14] : memref<64x128xbf16, #tpu.memory_space<vmem>>, vector<64x128xbf16>
      tpu.vector_store %arg5[%c0_13, %c0_14], %15 {strides = array<i32>} : memref<64x128xbf16, #tpu.memory_space<vmem>>, vector<64x128xbf16>,
    } else {
    }
    return
  }
  func.func @transform_0(%arg0: i32, %arg1: i32) -> (i32, i32) {
    %c0_i32 = arith.constant 0 : i32
    return %arg0, %arg1 : i32, i32
  }
  func.func @transform_1(%arg0: i32, %arg1: i32) -> (i32, i32) {
    %c0_i32 = arith.constant 0 : i32
    %c0_i32_0 = arith.constant 0 : i32
    return %arg1, %c0_i32 : i32, i32
  }
  func.func @transform_2(%arg0: i32, %arg1: i32) -> (i32, i32) {
    %c0_i32 = arith.constant 0 : i32
    %c0_i32_0 = arith.constant 0 : i32
    %c0_i32_1 = arith.constant 0 : i32
    return %c0_i32, %c0_i32_0 : i32, i32
  }
  func.func @transform_3(%arg0: i32, %arg1: i32) -> (i32, i32) {
    %c0_i32 = arith.constant 0 : i32
    %c0_i32_0 = arith.constant 0 : i32
    return %arg0, %c0_i32 : i32, i32
  }
}

module attributes {stable_mosaic.version = 11 : i64} {
  func.func @_xw_kernel(%arg0: i32, %arg1: i32, %arg2: memref<64x128xbf16, #tpu.memory_space<vmem>>, %arg3: memref<1x128x128xbf16, #tpu.memory_space<vmem>>, %arg4: memref<64x128xbf16, #tpu.memory_space<vmem>>) attributes {dimension_semantics = [#tpu.dimension_semantics<parallel>, #tpu.dimension_semantics<parallel>], iteration_bounds = array<i64: 4, 1>, scalar_prefetch = 0 : i64, scratch_operands = 0 : i64, tpu.core_type = #tpu.core_type<tc>, window_params = [{transform_indices = @transform_0, window_bounds = array<i64: 64, 128>}, {transform_indices = @transform_1, window_bounds = array<i64: 1, 128, 128>}, {transform_indices = @transform_2, window_bounds = array<i64: 64, 128>}]} {
    %c0 = arith.constant 0 : index
    %c0_0 = arith.constant 0 : index
    %0 = vector.load %arg2[%c0, %c0_0] : memref<64x128xbf16, #tpu.memory_space<vmem>>, vector<64x128xbf16>
    %c0_1 = arith.constant 0 : index
    %c0_2 = arith.constant 0 : index
    %c0_3 = arith.constant 0 : index
    %1 = vector.load %arg3[%c0_1, %c0_2, %c0_3] : memref<1x128x128xbf16, #tpu.memory_space<vmem>>, vector<1x128x128xbf16>
    %2 = vector.shape_cast %1 : vector<1x128x128xbf16> to vector<128x128xbf16>
    %cst = arith.constant dense<0.000000e+00> : vector<64x128xf32>
    %3 = tpu.matmul %0, %2, %cst {dimension_numbers = #tpu.dot_dimension_numbers<[1], [0], [0], [1], [0, 0, 1, 1], [], []>} : vector<64x128xbf16>, vector<128x128xbf16>, vector<64x128xf32> -> vector<64x128xf32>
    %4 = arith.truncf %3 : vector<64x128xf32> to vector<64x128xbf16>
    %c0_4 = arith.constant 0 : index
    %c0_5 = arith.constant 0 : index
    %5 = vector.load %arg4[%c0_4, %c0_5] : memref<64x128xbf16, #tpu.memory_space<vmem>>, vector<64x128xbf16>
    tpu.vector_store %arg4[%c0_4, %c0_5], %4 {strides = array<i32>} : memref<64x128xbf16, #tpu.memory_space<vmem>>, vector<64x128xbf16>,
    return
  }
  func.func @transform_0(%arg0: i32, %arg1: i32) -> (i32, i32) {
    %c0_i32 = arith.constant 0 : i32
    %c0_i32_0 = arith.constant 0 : i32
    return %arg1, %c0_i32 : i32, i32
  }
  func.func @transform_1(%arg0: i32, %arg1: i32) -> (i32, i32, i32) {
    %c0_i32 = arith.constant 0 : i32
    %c0_i32_0 = arith.constant 0 : i32
    %c0_i32_1 = arith.constant 0 : i32
    return %arg0, %c0_i32, %c0_i32_0 : i32, i32, i32
  }
  func.func @transform_2(%arg0: i32, %arg1: i32) -> (i32, i32) {
    %c1_i32 = arith.constant 1 : i32
    %0 = arith.muli %arg0, %c1_i32 : i32
    %1 = arith.addi %0, %arg1 : i32
    %c0_i32 = arith.constant 0 : i32
    %c0_i32_0 = arith.constant 0 : i32
    return %1, %c0_i32 : i32, i32
  }
}

</mosaic_0001>

<llo_original>
// kernel: _forward_impl.4
$region0: #{_forward_impl.4}
  #allocation0 [shape = 'u32[]', space=smem, size = 0x4, offset = 0x4, fixed_abs, tag = 'smem constant byte address 0x4 - core index']
  #allocation1 [shape = 'u32[144,128]{1,0:T(1,128)}', space=vmem, size = 0x12000, scoped, tag = 'internal scratch']
  %s0 = inlined_call_operand.vmem [shape: bf16[64,128], index: 0, kind: input, shape index: {}]
  %s1 = inlined_call_operand.vmem [shape: bf16[4,128,128], index: 1, kind: input, shape index: {}]
  %s2 = inlined_call_operand.vmem [shape: bf16[256,128], index: 2, kind: output, shape index: {}]
  %s3 = sld [smem:[#allocation0]]
  $region41: #{_forward_impl.4} parent=0
    _
  %s5 = ssub.s32 1, %s3
  %s6 = scalar_select 0, %s5, %s3
  loop: start=0, step=1, limit=6
  $region2: #{_forward_impl.4} parent=0 // loop_pre_header
    _
  $region3: #{_forward_impl.4} parent=0 // loop_header
    %s8 = sphi 0, %s12
    %p9 = scmp.ge.s32.totalorder %s8, 6
    %s15 = sphi 0, %s27
    %s16 = sphi 0, %s23
    %s17 = sphi 0, %s15
    %s18 = sphi 0, %s16
    %s19 = sphi 0, %s17
    %s20 = sphi 0, %s18
    %s30 = sphi 0, %s32
    %s33 = sphi 0, %s30
    %s34 = sphi 0, %s33
    %s50 = sphi 0, %s34
    %s56 = sphi 0, %s58
    %s59 = sphi 0, %s56
    %s60 = sphi 0, %s59
    %s76 = sphi 0, %s60
    %s84 = sphi 0, %s86
    %s87 = sphi 0, %s84
    %s88 = sphi 0, %s87
    %s104 = sphi 0, %s88
  $region4: #{_forward_impl.4} parent=0 // loop_header_branch
    %11 = sbr.rel (%p9) target = $region8
  $region5: #{_forward_impl.4} parent=0 // loop_body
    %s13 = ssub.s32 %s8, 1
    %s14 = ssub.s32 %s8, 2
    %s21 = sadd.s32 1, %s16
    %p22 = scmp.ge.s32.totalorder %s21, 1
    %s23 = scalar_select %p22, 0, %s21
    %s24 = sadd.s32 1, %s15
    %s25 = scalar_select %p22, %s24, %s15
    %p26 = scmp.ge.s32.totalorder %s25, 4
    %s27 = scalar_select %p26, 0, %s25
    %s28 = ssub.s32 %s16, %s23
    %p29 = scmp.eq.s32.totalorder %s28, 0
    %s31 = sadd.s32 %s30, 1
    %s32 = scalar_select %p29, %s30, %s31
    %p35 = pneg %p29
    %p36 = scmp.eq.s32.totalorder %s8, 3
    %p37 = por %p35, %p36
    %p38 = scmp.ne.s32.totalorder %s30, %s33
    %p39 = scmp.eq.s32.totalorder %s8, 0
    %p40 = por %p38, %p39
    %p41 = scmp.ne.s32.totalorder %s30, %s33
    %p42 = scmp.eq.s32.totalorder %s13, 3
    %p43 = por %p41, %p42
    %p44 = scmp.ne.s32.totalorder %s33, %s34
    %p45 = scmp.eq.s32.totalorder %s13, 0
    %p46 = por %p44, %p45
    %p47 = scmp.ne.s32.totalorder %s33, %s34
    %p48 = scmp.eq.s32.totalorder %s14, 3
    %p49 = por %p47, %p48
    %p51 = scmp.ne.s32.totalorder %s34, %s50
    %p52 = scmp.eq.s32.totalorder %s14, 0
    %p53 = por %p51, %p52
    %s54 = ssub.s32 %s15, %s27
    %p55 = scmp.eq.s32.totalorder %s54, 0
    %s57 = sadd.s32 %s56, 1
    %s58 = scalar_select %p55, %s56, %s57
    %p61 = pneg %p55
    %p62 = scmp.eq.s32.totalorder %s8, 3
    %p63 = por %p61, %p62
    %p64 = scmp.ne.s32.totalorder %s56, %s59
    %p65 = scmp.eq.s32.totalorder %s8, 0
    %p66 = por %p64, %p65
    %p67 = scmp.ne.s32.totalorder %s56, %s59
    %p68 = scmp.eq.s32.totalorder %s13, 3
    %p69 = por %p67, %p68
    %p70 = scmp.ne.s32.totalorder %s59, %s60
    %p71 = scmp.eq.s32.totalorder %s13, 0
    %p72 = por %p70, %p71
    %p73 = scmp.ne.s32.totalorder %s59, %s60
    %p74 = scmp.eq.s32.totalorder %s14, 3
    %p75 = por %p73, %p74
    %p77 = scmp.ne.s32.totalorder %s60, %s76
    %p78 = scmp.eq.s32.totalorder %s14, 0
    %p79 = por %p77, %p78
    %s80 = sadd.s32 %s15, %s16
    %s81 = sadd.s32 %s27, %s23
    %s82 = ssub.s32 %s80, %s81
    %p83 = scmp.eq.s32.totalorder %s82, 0
    %s85 = sadd.s32 %s84, 1
    %s86 = scalar_select %p83, %s84, %s85
    %p89 = pneg %p83
    %p90 = scmp.eq.s32.totalorder %s8, 3
    %p91 = por %p89, %p90
    %p92 = scmp.ne.s32.totalorder %s84, %s87
    %p93 = scmp.eq.s32.totalorder %s8, 0
    %p94 = por %p92, %p93
    %p95 = scmp.ne.s32.totalorder %s84, %s87
    %p96 = scmp.eq.s32.totalorder %s13, 3
    %p97 = por %p95, %p96
    %p98 = scmp.ne.s32.totalorder %s87, %s88
    %p99 = scmp.eq.s32.totalorder %s13, 0
    %p100 = por %p98, %p99
    %p101 = scmp.ne.s32.totalorder %s87, %s88
    %p102 = scmp.eq.s32.totalorder %s14, 3
    %p103 = por %p101, %p102
    %p105 = scmp.ne.s32.totalorder %s88, %s104
    %p106 = scmp.eq.s32.totalorder %s14, 0
    %p107 = por %p105, %p106
    %p108 = scmp.le.s32.totalorder 1, %s8
    %p109 = scmp.lt.s32.totalorder %s8, 5
    %p110 = pnand %p108, %p109
    %p111 = pneg %p110
    // Predicated region
    $region9: #{_forward_impl.4} parent=5 // pred_check
      _
    $region10: #{_forward_impl.4} parent=5 // pred_check_branch
      %113 = sbr.rel (%p110) target = $region12
    $region11: #{_forward_impl.4} parent=5 // pred_region
      %s114 = ssub.s32 %s8, 1
      // Predicated region
      $region13: #{_forward_impl.4} parent=11 // pred_check
        %p115 = pneg %p46
      $region14: #{_forward_impl.4} parent=11 // pred_check_branch
        %117 = sbr.rel (%p115) target = $region16
      $region15: #{_forward_impl.4} parent=11 // pred_region
        %s118 = smul.u32 8, %s18
        %p119 = scmp.lt.s32.totalorder %s118, 7
        %s120 = scalar_select %p119, %s118, 7
        %s121 = smul.addr %s120, 4
        %s122 = scalar_lea.vmem %s0, %s121
        %s123 = smul.u32 8, %s18
      $region16: #{_forward_impl.4} parent=11 // pred_fallthru
        _
    $region12: #{_forward_impl.4} parent=5 // pred_fallthru
      _
    %p124 = scmp.lt.s32.totalorder %s8, 4
    // Predicated region
    $region17: #{_forward_impl.4} parent=5 // pred_check
      %p125 = pneg %p124
    $region18: #{_forward_impl.4} parent=5 // pred_check_branch
      %127 = sbr.rel (%p125) target = $region20
    $region19: #{_forward_impl.4} parent=5 // pred_region
      // Predicated region
      $region21: #{_forward_impl.4} parent=19 // pred_check
        %p128 = pneg %p66
      $region22: #{_forward_impl.4} parent=19 // pred_check_branch
        %130 = sbr.rel (%p128) target = $region24
      $region23: #{_forward_impl.4} parent=19 // pred_region
        %p131 = scmp.lt.s32.totalorder %s15, 3
        %s132 = scalar_select %p131, %s15, 3
        %s133 = smul.addr %s132, 16
        %s134 = smul.addr %s133, 4
        %s135 = scalar_lea.vmem %s1, %s134
      $region24: #{_forward_impl.4} parent=19 // pred_fallthru
        _
    $region20: #{_forward_impl.4} parent=5 // pred_fallthru
      _
    %p136 = scmp.le.s32.totalorder 1, %s8
    %p137 = scmp.lt.s32.totalorder %s8, 5
    %p138 = pnand %p136, %p137
    %p139 = pneg %p138
    // Predicated region
    $region25: #{_forward_impl.4} parent=5 // pred_check
      _
    $region26: #{_forward_impl.4} parent=5 // pred_check_branch
      %141 = sbr.rel (%p138) target = $region28
    $region27: #{_forward_impl.4} parent=5 // pred_region
      %s142 = ssub.s32 %s8, 1
      %s143 = smul.u32 8, %s18
      %p144 = scmp.lt.s32.totalorder %s143, 7
      %s145 = scalar_select %p144, %s143, 7
      %s146 = smul.addr %s145, 4
      %s147 = scalar_lea.vmem %s0, %s146
      %p148 = pneg %p46
      %p149 = pneg %p43
      %p150 = scmp.lt.s32.totalorder %s17, 3
      %s151 = scalar_select %p150, %s17, 3
      %s152 = smul.addr %s151, 16
      %s153 = smul.addr %s152, 4
      %s154 = scalar_lea.vmem %s1, %s153
      %p155 = pneg %p72
      %p156 = pneg %p69
      %p157 = pneg %p100
      %p158 = pneg %p97
      %s159 = sadd.s32 %s17, %s18
      %s160 = smul.u32 8, %s159
      %p161 = scmp.lt.s32.totalorder %s160, 31
      %s162 = scalar_select %p161, %s160, 31
      %s163 = smul.addr %s162, 4
      %s164 = scalar_lea.vmem %s2, %s163
      %s165 = smul.u32 8, %s18
      %p166 = scmp.lt.s32.totalorder %s165, 7
      %s167 = scalar_select %p166, %s165, 7
      %s168 = smul.addr %s167, 4
      %s169 = scalar_lea.vmem %s0, %s168
      %s170 = smul.u32 8, %s18
      %p171 = scmp.lt.s32.totalorder %s17, 3
      %s172 = scalar_select %p171, %s17, 3
      %s173 = smul.addr %s172, 16
      %s174 = smul.addr %s173, 4
      %s175 = scalar_lea.vmem %s1, %s174
      %s176 = sadd.s32 %s17, %s18
      %s177 = smul.u32 8, %s176
      %p178 = scmp.lt.s32.totalorder %s177, 31
      %s179 = scalar_select %p178, %s177, 31
      %s180 = smul.addr %s179, 4
      %s181 = scalar_lea.vmem %s2, %s180
      %s182 = sadd.s32 %s17, %s18
      %s183 = smul.u32 8, %s182
      %v185 = vld [vmem:[%s169] sm:$0xf]
      %v186 = vld [vmem:[%s169 + $0x4] sm:$0xf]
      %v187 = vld [vmem:[%s169 + $0x8] sm:$0xf]
      %v188 = vld [vmem:[%s169 + $0xc] sm:$0xf]
      %v189 = vld [vmem:[%s169 + $0x10] sm:$0xf]
      %v190 = vld [vmem:[%s169 + $0x14] sm:$0xf]
      %v191 = vld [vmem:[%s169 + $0x18] sm:$0xf]
      %v192 = vld [vmem:[%s169 + $0x1c] sm:$0xf]
      %v193 = vld [vmem:[%s175] sm:$0xf]
      %v194 = vld [vmem:[%s175 + $0x4] sm:$0xf]
      %v195 = vld [vmem:[%s175 + $0x8] sm:$0xf]
      %v196 = vld [vmem:[%s175 + $0xc] sm:$0xf]
      %v197 = vld [vmem:[%s175 + $0x10] sm:$0xf]
      %v198 = vld [vmem:[%s175 + $0x14] sm:$0xf]
      %v199 = vld [vmem:[%s175 + $0x18] sm:$0xf]
      %v200 = vld [vmem:[%s175 + $0x1c] sm:$0xf]
      %v201 = vld [vmem:[%s175 + $0x20] sm:$0xf]
      %v202 = vld [vmem:[%s175 + $0x24] sm:$0xf]
      %v203 = vld [vmem:[%s175 + $0x28] sm:$0xf]
      %v204 = vld [vmem:[%s175 + $0x2c] sm:$0xf]
      %v205 = vld [vmem:[%s175 + $0x30] sm:$0xf]
      %v206 = vld [vmem:[%s175 + $0x34] sm:$0xf]
      %v207 = vld [vmem:[%s175 + $0x38] sm:$0xf]
      %v208 = vld [vmem:[%s175 + $0x3c] sm:$0xf]
      %v217 = vunpack.c.l.b16 %v185
      %v218 = vunpack.c.l.b16 %v186
      %v219 = vunpack.c.l.b16 %v187
      %v220 = vunpack.c.l.b16 %v188
      %v221 = vunpack.c.l.b16 %v189
      %v222 = vunpack.c.l.b16 %v190
      %v223 = vunpack.c.l.b16 %v191
      %v224 = vunpack.c.l.b16 %v192
      %v225 = vpack.c.b16 %v218, %v217
      %v226 = vpack.c.b16 %v220, %v219
      %v227 = vpack.c.b16 %v222, %v221
      %v228 = vpack.c.b16 %v224, %v223
      %v249 = vunpack.c.l.b16 %v193
      %v250 = vunpack.c.l.b16 %v194
      %v251 = vunpack.c.l.b16 %v195
      %v252 = vunpack.c.l.b16 %v196
      %v253 = vunpack.c.l.b16 %v197
      %v254 = vunpack.c.l.b16 %v198
      %v255 = vunpack.c.l.b16 %v199
      %v256 = vunpack.c.l.b16 %v200
      %v257 = vunpack.c.l.b16 %v201
      %v258 = vunpack.c.l.b16 %v202
      %v259 = vunpack.c.l.b16 %v203
      %v260 = vunpack.c.l.b16 %v204
      %v261 = vunpack.c.l.b16 %v205
      %v262 = vunpack.c.l.b16 %v206
      %v263 = vunpack.c.l.b16 %v207
      %v264 = vunpack.c.l.b16 %v208
      %v265 = vpack.c.b16 %v250, %v249
      %v266 = vpack.c.b16 %v252, %v251
      %v267 = vpack.c.b16 %v254, %v253
      %v268 = vpack.c.b16 %v256, %v255
      %v269 = vpack.c.b16 %v258, %v257
      %v270 = vpack.c.b16 %v260, %v259
      %v271 = vpack.c.b16 %v262, %v261
      %v272 = vpack.c.b16 %v264, %v263
      %281 = vmatprep.subr.bf16.mxu0 0
      %282 = vmatpush1.bf16.msra.mxu0 %v265
      %283 = vmatprep.subr.bf16.mxu0 0
      %284 = vmatpush1.bf16.msra.mxu0 %v266
      %285 = vmatprep.subr.bf16.mxu0 0
      %286 = vmatpush1.bf16.msra.mxu0 %v267
      %287 = vmatprep.subr.bf16.mxu0 0
      %288 = vmatpush1.bf16.msra.mxu0 %v268
      %289 = vmatprep.subr.bf16.mxu0 0
      %290 = vmatpush1.bf16.msra.mxu0 %v269
      %291 = vmatprep.subr.bf16.mxu0 0
      %292 = vmatpush1.bf16.msra.mxu0 %v270
      %293 = vmatprep.subr.bf16.mxu0 0
      %294 = vmatpush1.bf16.msra.mxu0 %v271
      %295 = vmatprep.subr.bf16.mxu0 0
      %296 = vmatpush1.bf16.msra.mxu0 %v272
      %297 = vmatprep.subr.bf16.mxu0 0
      %298 = vmatpush1.bf16.msra.mxu0 0
      %299 = vmatprep.subr.bf16.mxu0 0
      %300 = vmatpush1.bf16.msra.mxu0 0
      %301 = vmatprep.subr.bf16.mxu0 0
      %302 = vmatpush1.bf16.msra.mxu0 0
      %303 = vmatprep.subr.bf16.mxu0 0
      %304 = vmatpush1.bf16.msra.mxu0 0
      %305 = vmatprep.subr.bf16.mxu0 0
      %306 = vmatpush1.bf16.msra.mxu0 0
      %307 = vmatprep.subr.bf16.mxu0 0
      %308 = vmatpush1.bf16.msra.mxu0 0
      %309 = vmatprep.subr.bf16.mxu0 0
      %310 = vmatpush1.bf16.msra.mxu0 0
      %311 = vmatprep.subr.bf16.mxu0 0
      %312 = vmatpush1.bf16.msra.mxu0 0
      %313 = vmatprep.mubr.bf16.mxu0 0
      %314 = vmatmul.mubr.bf16.gmra.mrb[0].mxu0 %v225
      %v315 = vpop.f32.mrb[0].mxu0
      %v316 = vadd.f32 0.0, %v315
      %v317 = vpop.f32.mrb[0].mxu0
      %v318 = vpop.f32.mrb[0].mxu0
      %v319 = vadd.f32 0.0, %v318
      %v320 = vpop.f32.mrb[0].mxu0
      %321 = vmatprep.mubr.bf16.mxu0 0
      %322 = vmatmul.mubr.bf16.gmra.mrb[0].mxu0 %v226
      %v323 = vpop.f32.mrb[0].mxu0
      %v324 = vadd.f32 0.0, %v323
      %v325 = vpop.f32.mrb[0].mxu0
      %v326 = vpop.f32.mrb[0].mxu0
      %v327 = vadd.f32 0.0, %v326
      %v328 = vpop.f32.mrb[0].mxu0
      %329 = vmatprep.mubr.bf16.mxu0 0
      %330 = vmatmul.mubr.bf16.gmra.mrb[0].mxu0 %v227
      %v331 = vpop.f32.mrb[0].mxu0
      %v332 = vadd.f32 0.0, %v331
      %v333 = vpop.f32.mrb[0].mxu0
      %v334 = vpop.f32.mrb[0].mxu0
      %v335 = vadd.f32 0.0, %v334
      %v336 = vpop.f32.mrb[0].mxu0
      %337 = vmatprep.mubr.bf16.mxu0 0
      %338 = vmatmul.mubr.bf16.gmra.mrb[0].mxu0 %v228
      %v339 = vpop.f32.mrb[0].mxu0
      %v340 = vadd.f32 0.0, %v339
      %v341 = vpop.f32.mrb[0].mxu0
      %v342 = vpop.f32.mrb[0].mxu0
      %v343 = vadd.f32 0.0, %v342
      %v344 = vpop.f32.mrb[0].mxu0
      %345 = vdwg.mxu0
      %v346 = vpack.c.bf16 %v319, %v316
      %v347 = vpack.c.bf16 %v327, %v324
      %v348 = vpack.c.bf16 %v335, %v332
      %v349 = vpack.c.bf16 %v343, %v340
      %v354 = vunpack.c.l.b16 %v346
      %v355 = vunpack.c.h.b16 %v346
      %v356 = vunpack.c.l.b16 %v347
      %v357 = vunpack.c.h.b16 %v347
      %v358 = vunpack.c.l.b16 %v348
      %v359 = vunpack.c.h.b16 %v348
      %v360 = vunpack.c.l.b16 %v349
      %v361 = vunpack.c.h.b16 %v349
      %v362 = vpack.c.b16 %v354, %v354
      %v363 = vpack.c.b16 %v355, %v355
      %v364 = vpack.c.b16 %v356, %v356
      %v365 = vpack.c.b16 %v357, %v357
      %v366 = vpack.c.b16 %v358, %v358
      %v367 = vpack.c.b16 %v359, %v359
      %v368 = vpack.c.b16 %v360, %v360
      %v369 = vpack.c.b16 %v361, %v361
      %378 = vst [vmem:[%s181] sm:$0xf] %v362
      %379 = vst [vmem:[%s181 + $0x4] sm:$0xf] %v363
      %380 = vst [vmem:[%s181 + $0x8] sm:$0xf] %v364
      %381 = vst [vmem:[%s181 + $0xc] sm:$0xf] %v365
      %382 = vst [vmem:[%s181 + $0x10] sm:$0xf] %v366
      %383 = vst [vmem:[%s181 + $0x14] sm:$0xf] %v367
      %384 = vst [vmem:[%s181 + $0x18] sm:$0xf] %v368
      %385 = vst [vmem:[%s181 + $0x1c] sm:$0xf] %v369
      %s386 = sadd.s32 %s17, %s18
      %s387 = smul.u32 8, %s386
      %p388 = scmp.lt.s32.totalorder %s387, 31
      %s389 = scalar_select %p388, %s387, 31
      %s390 = smul.addr %s389, 4
      %s391 = scalar_lea.vmem %s2, %s390
      // Predicated region
      $region29: #{_forward_impl.4} parent=27 // pred_check
        %p392 = pneg %p97
      $region30: #{_forward_impl.4} parent=27 // pred_check_branch
        %394 = sbr.rel (%p392) target = $region32
      $region31: #{_forward_impl.4} parent=27 // pred_region
        %s395 = sadd.s32 %s17, %s18
        %s396 = smul.u32 8, %s395
      $region32: #{_forward_impl.4} parent=27 // pred_fallthru
        _
    $region28: #{_forward_impl.4} parent=5 // pred_fallthru
      _
    %p397 = scmp.le.s32.totalorder 2, %s8
    // Predicated region
    $region33: #{_forward_impl.4} parent=5 // pred_check
      %p398 = pneg %p397
    $region34: #{_forward_impl.4} parent=5 // pred_check_branch
      %400 = sbr.rel (%p398) target = $region36
    $region35: #{_forward_impl.4} parent=5 // pred_region
      %s401 = ssub.s32 %s8, 2
      // Predicated region
      $region37: #{_forward_impl.4} parent=35 // pred_check
        %p402 = pneg %p103
      $region38: #{_forward_impl.4} parent=35 // pred_check_branch
        %404 = sbr.rel (%p402) target = $region40
      $region39: #{_forward_impl.4} parent=35 // pred_region
        %s405 = sadd.s32 %s19, %s20
        %s406 = smul.u32 8, %s405
        %p407 = scmp.lt.s32.totalorder %s406, 31
        %s408 = scalar_select %p407, %s406, 31
        %s409 = smul.addr %s408, 4
        %s410 = scalar_lea.vmem %s2, %s409
      $region40: #{_forward_impl.4} parent=35 // pred_fallthru
        _
    $region36: #{_forward_impl.4} parent=5 // pred_fallthru
      _
  $region6: #{_forward_impl.4} parent=0 // loop_footer
    %s12 = sadd.s32 1, %s8
  $region7: #{_forward_impl.4} parent=0 // loop_footer_branch
    %7 = sbr.rel target = $region3
  $region8: #{_forward_impl.4} parent=0 // loop_exit
    _

// kernel: _forward_impl.5
$region0: #{_forward_impl.5}
  #allocation0 [shape = 'u32[]', space=smem, size = 0x4, offset = 0x4, fixed_abs, tag = 'smem constant byte address 0x4 - core index']
  #allocation1 [shape = 'u32[144,128]{1,0:T(1,128)}', space=vmem, size = 0x12000, scoped, tag = 'internal scratch']
  #allocation2 [shape = 'f32[64,128]{1,0:T(8,128)}', space=vmem, size = 0x8000, scoped, tag = 'scratch operand']
  %s0 = inlined_call_operand.vmem [shape: bf16[64,256], index: 0, kind: input, shape index: {}]
  %s1 = inlined_call_operand.vmem [shape: bf16[256,128], index: 1, kind: input, shape index: {}]
  %s2 = inlined_call_operand.vmem [shape: f32[1,128], index: 2, kind: input, shape index: {}]
  %s3 = inlined_call_operand.vmem [shape: bf16[64,128], index: 3, kind: output, shape index: {}]
  %s4 = sld [smem:[#allocation0]]
  $region30: #{_forward_impl.5} parent=0
    _
  %s6 = ssub.s32 1, %s4
  %s7 = scalar_select 0, %s6, %s4
  // Predicated region
  $region2: #{_forward_impl.5} parent=0 // pred_check
    _
  $region3: #{_forward_impl.5} parent=0 // pred_check_branch
    %9 = sbr.rel (0) target = $region5
  $region4: #{_forward_impl.5} parent=0 // pred_region
    _
  $region5: #{_forward_impl.5} parent=0 // pred_fallthru
    _
  // Predicated region
  $region6: #{_forward_impl.5} parent=0 // pred_check
    _
  $region7: #{_forward_impl.5} parent=0 // pred_check_branch
    %11 = sbr.rel (0) target = $region9
  $region8: #{_forward_impl.5} parent=0 // pred_region
    _
  $region9: #{_forward_impl.5} parent=0 // pred_fallthru
    _
  // Predicated region
  $region10: #{_forward_impl.5} parent=0 // pred_check
    _
  $region11: #{_forward_impl.5} parent=0 // pred_check_branch
    %13 = sbr.rel (0) target = $region13
  $region12: #{_forward_impl.5} parent=0 // pred_region
    _
  $region13: #{_forward_impl.5} parent=0 // pred_fallthru
    _
  %p15 = scmp.eq.s32.totalorder 0, 0
  // Predicated region
  $region14: #{_forward_impl.5} parent=0 // pred_check
    %p16 = pneg %p15
  $region15: #{_forward_impl.5} parent=0 // pred_check_branch
    %18 = sbr.rel (%p16) target = $region17
  $region16: #{_forward_impl.5} parent=0 // pred_region
    %v19 = vld [vmem:[%s2] sm:$0x1]
    %v21 = vlaneseq
    %v22 = vshrl.u32 %v21, 7
    %v23 = vsub.s32 0, %v22
    %v24 = vrot.slane %v19, %v23
    %26 = vst [vmem:[#allocation2] sm:$0xff] %v24
    %27 = vst [vmem:[#allocation2 + $0x8] sm:$0xff] %v24
    %28 = vst [vmem:[#allocation2 + $0x10] sm:$0xff] %v24
    %29 = vst [vmem:[#allocation2 + $0x18] sm:$0xff] %v24
    %30 = vst [vmem:[#allocation2 + $0x20] sm:$0xff] %v24
    %31 = vst [vmem:[#allocation2 + $0x28] sm:$0xff] %v24
    %32 = vst [vmem:[#allocation2 + $0x30] sm:$0xff] %v24
    %33 = vst [vmem:[#allocation2 + $0x38] sm:$0xff] %v24
  $region17: #{_forward_impl.5} parent=0 // pred_fallthru
    _
  %v34 = vld [vmem:[#allocation2] sm:$0xff]
  %v35 = vld [vmem:[#allocation2 + $0x8] sm:$0xff]
  %v36 = vld [vmem:[#allocation2 + $0x10] sm:$0xff]
  %v37 = vld [vmem:[#allocation2 + $0x18] sm:$0xff]
  %v38 = vld [vmem:[#allocation2 + $0x20] sm:$0xff]
  %v39 = vld [vmem:[#allocation2 + $0x28] sm:$0xff]
  %v40 = vld [vmem:[#allocation2 + $0x30] sm:$0xff]
  %v41 = vld [vmem:[#allocation2 + $0x38] sm:$0xff]
  %v42 = vld [vmem:[%s0] sm:$0xff]
  %v43 = vld [vmem:[%s0 + $0x8] sm:$0xff]
  %v44 = vld [vmem:[%s0 + $0x10] sm:$0xff]
  %v45 = vld [vmem:[%s0 + $0x18] sm:$0xff]
  %v46 = vld [vmem:[%s0 + $0x20] sm:$0xff]
  %v47 = vld [vmem:[%s0 + $0x28] sm:$0xff]
  %v48 = vld [vmem:[%s0 + $0x30] sm:$0xff]
  %v49 = vld [vmem:[%s0 + $0x38] sm:$0xff]
  %v50 = vld [vmem:[%s1] sm:$0xf]
  %v51 = vld [vmem:[%s1 + $0x4] sm:$0xf]
  %v52 = vld [vmem:[%s1 + $0x8] sm:$0xf]
  %v53 = vld [vmem:[%s1 + $0xc] sm:$0xf]
  %v54 = vld [vmem:[%s1 + $0x10] sm:$0xf]
  %v55 = vld [vmem:[%s1 + $0x14] sm:$0xf]
  %v56 = vld [vmem:[%s1 + $0x18] sm:$0xf]
  %v57 = vld [vmem:[%s1 + $0x1c] sm:$0xf]
  %v58 = vld [vmem:[%s1 + $0x20] sm:$0xf]
  %v59 = vld [vmem:[%s1 + $0x24] sm:$0xf]
  %v60 = vld [vmem:[%s1 + $0x28] sm:$0xf]
  %v61 = vld [vmem:[%s1 + $0x2c] sm:$0xf]
  %v62 = vld [vmem:[%s1 + $0x30] sm:$0xf]
  %v63 = vld [vmem:[%s1 + $0x34] sm:$0xf]
  %v64 = vld [vmem:[%s1 + $0x38] sm:$0xf]
  %v65 = vld [vmem:[%s1 + $0x3c] sm:$0xf]
  %v66 = vld [vmem:[%s1 + $0x40] sm:$0xf]
  %v67 = vld [vmem:[%s1 + $0x44] sm:$0xf]
  %v68 = vld [vmem:[%s1 + $0x48] sm:$0xf]
  %v69 = vld [vmem:[%s1 + $0x4c] sm:$0xf]
  %v70 = vld [vmem:[%s1 + $0x50] sm:$0xf]
  %v71 = vld [vmem:[%s1 + $0x54] sm:$0xf]
  %v72 = vld [vmem:[%s1 + $0x58] sm:$0xf]
  %v73 = vld [vmem:[%s1 + $0x5c] sm:$0xf]
  %v74 = vld [vmem:[%s1 + $0x60] sm:$0xf]
  %v75 = vld [vmem:[%s1 + $0x64] sm:$0xf]
  %v76 = vld [vmem:[%s1 + $0x68] sm:$0xf]
  %v77 = vld [vmem:[%s1 + $0x6c] sm:$0xf]
  %v78 = vld [vmem:[%s1 + $0x70] sm:$0xf]
  %v79 = vld [vmem:[%s1 + $0x74] sm:$0xf]
  %v80 = vld [vmem:[%s1 + $0x78] sm:$0xf]
  %v81 = vld [vmem:[%s1 + $0x7c] sm:$0xf]
  %v90 = vunpack.c.l.b16 %v42
  %v91 = vunpack.c.h.b16 %v42
  %v92 = vunpack.c.l.b16 %v43
  %v93 = vunpack.c.h.b16 %v43
  %v94 = vunpack.c.l.b16 %v44
  %v95 = vunpack.c.h.b16 %v44
  %v96 = vunpack.c.l.b16 %v45
  %v97 = vunpack.c.h.b16 %v45
  %v98 = vunpack.c.l.b16 %v46
  %v99 = vunpack.c.h.b16 %v46
  %v100 = vunpack.c.l.b16 %v47
  %v101 = vunpack.c.h.b16 %v47
  %v102 = vunpack.c.l.b16 %v48
  %v103 = vunpack.c.h.b16 %v48
  %v104 = vunpack.c.l.b16 %v49
  %v105 = vunpack.c.h.b16 %v49
  %v106 = vpack.c.b16 %v92, %v90
  %v107 = vpack.c.b16 %v93, %v91
  %v108 = vpack.c.b16 %v96, %v94
  %v109 = vpack.c.b16 %v97, %v95
  %v110 = vpack.c.b16 %v100, %v98
  %v111 = vpack.c.b16 %v101, %v99
  %v112 = vpack.c.b16 %v104, %v102
  %v113 = vpack.c.b16 %v105, %v103
  %v154 = vunpack.c.l.b16 %v50
  %v155 = vunpack.c.l.b16 %v51
  %v156 = vunpack.c.l.b16 %v52
  %v157 = vunpack.c.l.b16 %v53
  %v158 = vunpack.c.l.b16 %v54
  %v159 = vunpack.c.l.b16 %v55
  %v160 = vunpack.c.l.b16 %v56
  %v161 = vunpack.c.l.b16 %v57
  %v162 = vunpack.c.l.b16 %v58
  %v163 = vunpack.c.l.b16 %v59
  %v164 = vunpack.c.l.b16 %v60
  %v165 = vunpack.c.l.b16 %v61
  %v166 = vunpack.c.l.b16 %v62
  %v167 = vunpack.c.l.b16 %v63
  %v168 = vunpack.c.l.b16 %v64
  %v169 = vunpack.c.l.b16 %v65
  %v170 = vunpack.c.l.b16 %v66
  %v171 = vunpack.c.l.b16 %v67
  %v172 = vunpack.c.l.b16 %v68
  %v173 = vunpack.c.l.b16 %v69
  %v174 = vunpack.c.l.b16 %v70
  %v175 = vunpack.c.l.b16 %v71
  %v176 = vunpack.c.l.b16 %v72
  %v177 = vunpack.c.l.b16 %v73
  %v178 = vunpack.c.l.b16 %v74
  %v179 = vunpack.c.l.b16 %v75
  %v180 = vunpack.c.l.b16 %v76
  %v181 = vunpack.c.l.b16 %v77
  %v182 = vunpack.c.l.b16 %v78
  %v183 = vunpack.c.l.b16 %v79
  %v184 = vunpack.c.l.b16 %v80
  %v185 = vunpack.c.l.b16 %v81
  %v186 = vpack.c.b16 %v155, %v154
  %v187 = vpack.c.b16 %v157, %v156
  %v188 = vpack.c.b16 %v159, %v158
  %v189 = vpack.c.b16 %v161, %v160
  %v190 = vpack.c.b16 %v163, %v162
  %v191 = vpack.c.b16 %v165, %v164
  %v192 = vpack.c.b16 %v167, %v166
  %v193 = vpack.c.b16 %v169, %v168
  %v194 = vpack.c.b16 %v171, %v170
  %v195 = vpack.c.b16 %v173, %v172
  %v196 = vpack.c.b16 %v175, %v174
  %v197 = vpack.c.b16 %v177, %v176
  %v198 = vpack.c.b16 %v179, %v178
  %v199 = vpack.c.b16 %v181, %v180
  %v200 = vpack.c.b16 %v183, %v182
  %v201 = vpack.c.b16 %v185, %v184
  %218 = vmatprep.subr.bf16.mxu0 0
  %219 = vmatpush1.bf16.msra.mxu0 %v186
  %220 = vmatprep.subr.bf16.mxu0 0
  %221 = vmatpush1.bf16.msra.mxu0 %v187
  %222 = vmatprep.subr.bf16.mxu0 0
  %223 = vmatpush1.bf16.msra.mxu0 %v188
  %224 = vmatprep.subr.bf16.mxu0 0
  %225 = vmatpush1.bf16.msra.mxu0 %v189
  %226 = vmatprep.subr.bf16.mxu0 0
  %227 = vmatpush1.bf16.msra.mxu0 %v190
  %228 = vmatprep.subr.bf16.mxu0 0
  %229 = vmatpush1.bf16.msra.mxu0 %v191
  %230 = vmatprep.subr.bf16.mxu0 0
  %231 = vmatpush1.bf16.msra.mxu0 %v192
  %232 = vmatprep.subr.bf16.mxu0 0
  %233 = vmatpush1.bf16.msra.mxu0 %v193
  %234 = vmatprep.subr.bf16.mxu0 0
  %235 = vmatpush1.bf16.msra.mxu0 %v194
  %236 = vmatprep.subr.bf16.mxu0 0
  %237 = vmatpush1.bf16.msra.mxu0 %v195
  %238 = vmatprep.subr.bf16.mxu0 0
  %239 = vmatpush1.bf16.msra.mxu0 %v196
  %240 = vmatprep.subr.bf16.mxu0 0
  %241 = vmatpush1.bf16.msra.mxu0 %v197
  %242 = vmatprep.subr.bf16.mxu0 0
  %243 = vmatpush1.bf16.msra.mxu0 %v198
  %244 = vmatprep.subr.bf16.mxu0 0
  %245 = vmatpush1.bf16.msra.mxu0 %v199
  %246 = vmatprep.subr.bf16.mxu0 0
  %247 = vmatpush1.bf16.msra.mxu0 %v200
  %248 = vmatprep.subr.bf16.mxu0 0
  %249 = vmatpush1.bf16.msra.mxu0 %v201
  %250 = vmatprep.mubr.bf16.mxu0 %v107
  %251 = vmatmul.mubr.bf16.gmra.mrb[0].mxu0 %v106
  %v252 = vpop.f32.mrb[0].mxu0
  %v253 = vadd.f32 0.0, %v252
  %v254 = vpop.f32.mrb[0].mxu0
  %v255 = vpop.f32.mrb[0].mxu0
  %v256 = vadd.f32 0.0, %v255
  %v257 = vpop.f32.mrb[0].mxu0
  %258 = vmatprep.mubr.bf16.mxu0 %v109
  %259 = vmatmul.mubr.bf16.gmra.mrb[0].mxu0 %v108
  %v260 = vpop.f32.mrb[0].mxu0
  %v261 = vadd.f32 0.0, %v260
  %v262 = vpop.f32.mrb[0].mxu0
  %v263 = vpop.f32.mrb[0].mxu0
  %v264 = vadd.f32 0.0, %v263
  %v265 = vpop.f32.mrb[0].mxu0
  %266 = vmatprep.mubr.bf16.mxu0 %v111
  %267 = vmatmul.mubr.bf16.gmra.mrb[0].mxu0 %v110
  %v268 = vpop.f32.mrb[0].mxu0
  %v269 = vadd.f32 0.0, %v268
  %v270 = vpop.f32.mrb[0].mxu0
  %v271 = vpop.f32.mrb[0].mxu0
  %v272 = vadd.f32 0.0, %v271
  %v273 = vpop.f32.mrb[0].mxu0
  %274 = vmatprep.mubr.bf16.mxu0 %v113
  %275 = vmatmul.mubr.bf16.gmra.mrb[0].mxu0 %v112
  %v276 = vpop.f32.mrb[0].mxu0
  %v277 = vadd.f32 0.0, %v276
  %v278 = vpop.f32.mrb[0].mxu0
  %v279 = vpop.f32.mrb[0].mxu0
  %v280 = vadd.f32 0.0, %v279
  %v281 = vpop.f32.mrb[0].mxu0
  %282 = vdwg.mxu0
  %v283 = vadd.f32 %v34, %v253
  %v284 = vadd.f32 %v35, %v256
  %v285 = vadd.f32 %v36, %v261
  %v286 = vadd.f32 %v37, %v264
  %v287 = vadd.f32 %v38, %v269
  %v288 = vadd.f32 %v39, %v272
  %v289 = vadd.f32 %v40, %v277
  %v290 = vadd.f32 %v41, %v280
  %291 = vst [vmem:[#allocation2] sm:$0xff] %v283
  %292 = vst [vmem:[#allocation2 + $0x8] sm:$0xff] %v284
  %293 = vst [vmem:[#allocation2 + $0x10] sm:$0xff] %v285
  %294 = vst [vmem:[#allocation2 + $0x18] sm:$0xff] %v286
  %295 = vst [vmem:[#allocation2 + $0x20] sm:$0xff] %v287
  %296 = vst [vmem:[#allocation2 + $0x28] sm:$0xff] %v288
  %297 = vst [vmem:[#allocation2 + $0x30] sm:$0xff] %v289
  %298 = vst [vmem:[#allocation2 + $0x38] sm:$0xff] %v290
  // Predicated region
  $region18: #{_forward_impl.5} parent=0 // pred_check
    %p299 = pneg %p15
  $region19: #{_forward_impl.5} parent=0 // pred_check_branch
    %301 = sbr.rel (%p299) target = $region21
  $region20: #{_forward_impl.5} parent=0 // pred_region
    %v302 = vld [vmem:[#allocation2] sm:$0xff]
    %v303 = vld [vmem:[#allocation2 + $0x8] sm:$0xff]
    %v304 = vld [vmem:[#allocation2 + $0x10] sm:$0xff]
    %v305 = vld [vmem:[#allocation2 + $0x18] sm:$0xff]
    %v306 = vld [vmem:[#allocation2 + $0x20] sm:$0xff]
    %v307 = vld [vmem:[#allocation2 + $0x28] sm:$0xff]
    %v308 = vld [vmem:[#allocation2 + $0x30] sm:$0xff]
    %v309 = vld [vmem:[#allocation2 + $0x38] sm:$0xff]
    %v310 = vmax.f32 %v302, 0.0
    %v311 = vmax.f32 %v303, 0.0
    %v312 = vmax.f32 %v304, 0.0
    %v313 = vmax.f32 %v305, 0.0
    %v314 = vmax.f32 %v306, 0.0
    %v315 = vmax.f32 %v307, 0.0
    %v316 = vmax.f32 %v308, 0.0
    %v317 = vmax.f32 %v309, 0.0
    %v318 = vpack.c.bf16 %v311, %v310
    %v319 = vpack.c.bf16 %v313, %v312
    %v320 = vpack.c.bf16 %v315, %v314
    %v321 = vpack.c.bf16 %v317, %v316
    %v326 = vunpack.c.l.b16 %v318
    %v327 = vunpack.c.h.b16 %v318
    %v328 = vunpack.c.l.b16 %v319
    %v329 = vunpack.c.h.b16 %v319
    %v330 = vunpack.c.l.b16 %v320
    %v331 = vunpack.c.h.b16 %v320
    %v332 = vunpack.c.l.b16 %v321
    %v333 = vunpack.c.h.b16 %v321
    %v334 = vpack.c.b16 %v326, %v326
    %v335 = vpack.c.b16 %v327, %v327
    %v336 = vpack.c.b16 %v328, %v328
    %v337 = vpack.c.b16 %v329, %v329
    %v338 = vpack.c.b16 %v330, %v330
    %v339 = vpack.c.b16 %v331, %v331
    %v340 = vpack.c.b16 %v332, %v332
    %v341 = vpack.c.b16 %v333, %v333
    %350 = vst [vmem:[%s3] sm:$0xf] %v334
    %351 = vst [vmem:[%s3 + $0x4] sm:$0xf] %v335
    %352 = vst [vmem:[%s3 + $0x8] sm:$0xf] %v336
    %353 = vst [vmem:[%s3 + $0xc] sm:$0xf] %v337
    %354 = vst [vmem:[%s3 + $0x10] sm:$0xf] %v338
    %355 = vst [vmem:[%s3 + $0x14] sm:$0xf] %v339
    %356 = vst [vmem:[%s3 + $0x18] sm:$0xf] %v340
    %357 = vst [vmem:[%s3 + $0x1c] sm:$0xf] %v341
  $region21: #{_forward_impl.5} parent=0 // pred_fallthru
    _
  // Predicated region
  $region22: #{_forward_impl.5} parent=0 // pred_check
    _
  $region23: #{_forward_impl.5} parent=0 // pred_check_branch
    %359 = sbr.rel (0) target = $region25
  $region24: #{_forward_impl.5} parent=0 // pred_region
    _
  $region25: #{_forward_impl.5} parent=0 // pred_fallthru
    _
  // Predicated region
  $region26: #{_forward_impl.5} parent=0 // pred_check
    _
  $region27: #{_forward_impl.5} parent=0 // pred_check_branch
    %361 = sbr.rel (0) target = $region29
  $region28: #{_forward_impl.5} parent=0 // pred_region
    _
  $region29: #{_forward_impl.5} parent=0 // pred_fallthru
    _

// kernel: _forward_impl.7
$region0: #{_forward_impl.7}
  #allocation0 [shape = 'u32[]', space=smem, size = 0x4, offset = 0x4, fixed_abs, tag = 'smem constant byte address 0x4 - core index']
  #allocation1 [shape = 'u32[144,128]{1,0:T(1,128)}', space=vmem, size = 0x12000, scoped, tag = 'internal scratch']
  #allocation2 [shape = 'f32[64,128]{1,0:T(8,128)}', space=vmem, size = 0x8000, scoped, tag = 'scratch operand']
  %s0 = inlined_call_operand.vmem [shape: bf16[64,256], index: 0, kind: input, shape index: {}]
  %s1 = inlined_call_operand.vmem [shape: bf16[256,128], index: 1, kind: input, shape index: {}]
  %s2 = inlined_call_operand.vmem [shape: f32[1,128], index: 2, kind: input, shape index: {}]
  %s3 = inlined_call_operand.vmem [shape: bf16[64,128], index: 3, kind: output, shape index: {}]
  %s4 = sld [smem:[#allocation0]]
  $region30: #{_forward_impl.7} parent=0
    _
  %s6 = ssub.s32 1, %s4
  %s7 = scalar_select 0, %s6, %s4
  // Predicated region
  $region2: #{_forward_impl.7} parent=0 // pred_check
    _
  $region3: #{_forward_impl.7} parent=0 // pred_check_branch
    %9 = sbr.rel (0) target = $region5
  $region4: #{_forward_impl.7} parent=0 // pred_region
    _
  $region5: #{_forward_impl.7} parent=0 // pred_fallthru
    _
  // Predicated region
  $region6: #{_forward_impl.7} parent=0 // pred_check
    _
  $region7: #{_forward_impl.7} parent=0 // pred_check_branch
    %11 = sbr.rel (0) target = $region9
  $region8: #{_forward_impl.7} parent=0 // pred_region
    _
  $region9: #{_forward_impl.7} parent=0 // pred_fallthru
    _
  // Predicated region
  $region10: #{_forward_impl.7} parent=0 // pred_check
    _
  $region11: #{_forward_impl.7} parent=0 // pred_check_branch
    %13 = sbr.rel (0) target = $region13
  $region12: #{_forward_impl.7} parent=0 // pred_region
    _
  $region13: #{_forward_impl.7} parent=0 // pred_fallthru
    _
  %p15 = scmp.eq.s32.totalorder 0, 0
  // Predicated region
  $region14: #{_forward_impl.7} parent=0 // pred_check
    %p16 = pneg %p15
  $region15: #{_forward_impl.7} parent=0 // pred_check_branch
    %18 = sbr.rel (%p16) target = $region17
  $region16: #{_forward_impl.7} parent=0 // pred_region
    %v19 = vld [vmem:[%s2] sm:$0x1]
    %v21 = vlaneseq
    %v22 = vshrl.u32 %v21, 7
    %v23 = vsub.s32 0, %v22
    %v24 = vrot.slane %v19, %v23
    %26 = vst [vmem:[#allocation2] sm:$0xff] %v24
    %27 = vst [vmem:[#allocation2 + $0x8] sm:$0xff] %v24
    %28 = vst [vmem:[#allocation2 + $0x10] sm:$0xff] %v24
    %29 = vst [vmem:[#allocation2 + $0x18] sm:$0xff] %v24
    %30 = vst [vmem:[#allocation2 + $0x20] sm:$0xff] %v24
    %31 = vst [vmem:[#allocation2 + $0x28] sm:$0xff] %v24
    %32 = vst [vmem:[#allocation2 + $0x30] sm:$0xff] %v24
    %33 = vst [vmem:[#allocation2 + $0x38] sm:$0xff] %v24
  $region17: #{_forward_impl.7} parent=0 // pred_fallthru
    _
  %v34 = vld [vmem:[#allocation2] sm:$0xff]
  %v35 = vld [vmem:[#allocation2 + $0x8] sm:$0xff]
  %v36 = vld [vmem:[#allocation2 + $0x10] sm:$0xff]
  %v37 = vld [vmem:[#allocation2 + $0x18] sm:$0xff]
  %v38 = vld [vmem:[#allocation2 + $0x20] sm:$0xff]
  %v39 = vld [vmem:[#allocation2 + $0x28] sm:$0xff]
  %v40 = vld [vmem:[#allocation2 + $0x30] sm:$0xff]
  %v41 = vld [vmem:[#allocation2 + $0x38] sm:$0xff]
  %v42 = vld [vmem:[%s0] sm:$0xff]
  %v43 = vld [vmem:[%s0 + $0x8] sm:$0xff]
  %v44 = vld [vmem:[%s0 + $0x10] sm:$0xff]
  %v45 = vld [vmem:[%s0 + $0x18] sm:$0xff]
  %v46 = vld [vmem:[%s0 + $0x20] sm:$0xff]
  %v47 = vld [vmem:[%s0 + $0x28] sm:$0xff]
  %v48 = vld [vmem:[%s0 + $0x30] sm:$0xff]
  %v49 = vld [vmem:[%s0 + $0x38] sm:$0xff]
  %v50 = vld [vmem:[%s1] sm:$0xf]
  %v51 = vld [vmem:[%s1 + $0x4] sm:$0xf]
  %v52 = vld [vmem:[%s1 + $0x8] sm:$0xf]
  %v53 = vld [vmem:[%s1 + $0xc] sm:$0xf]
  %v54 = vld [vmem:[%s1 + $0x10] sm:$0xf]
  %v55 = vld [vmem:[%s1 + $0x14] sm:$0xf]
  %v56 = vld [vmem:[%s1 + $0x18] sm:$0xf]
  %v57 = vld [vmem:[%s1 + $0x1c] sm:$0xf]
  %v58 = vld [vmem:[%s1 + $0x20] sm:$0xf]
  %v59 = vld [vmem:[%s1 + $0x24] sm:$0xf]
  %v60 = vld [vmem:[%s1 + $0x28] sm:$0xf]
  %v61 = vld [vmem:[%s1 + $0x2c] sm:$0xf]
  %v62 = vld [vmem:[%s1 + $0x30] sm:$0xf]
  %v63 = vld [vmem:[%s1 + $0x34] sm:$0xf]
  %v64 = vld [vmem:[%s1 + $0x38] sm:$0xf]
  %v65 = vld [vmem:[%s1 + $0x3c] sm:$0xf]
  %v66 = vld [vmem:[%s1 + $0x40] sm:$0xf]
  %v67 = vld [vmem:[%s1 + $0x44] sm:$0xf]
  %v68 = vld [vmem:[%s1 + $0x48] sm:$0xf]
  %v69 = vld [vmem:[%s1 + $0x4c] sm:$0xf]
  %v70 = vld [vmem:[%s1 + $0x50] sm:$0xf]
  %v71 = vld [vmem:[%s1 + $0x54] sm:$0xf]
  %v72 = vld [vmem:[%s1 + $0x58] sm:$0xf]
  %v73 = vld [vmem:[%s1 + $0x5c] sm:$0xf]
  %v74 = vld [vmem:[%s1 + $0x60] sm:$0xf]
  %v75 = vld [vmem:[%s1 + $0x64] sm:$0xf]
  %v76 = vld [vmem:[%s1 + $0x68] sm:$0xf]
  %v77 = vld [vmem:[%s1 + $0x6c] sm:$0xf]
  %v78 = vld [vmem:[%s1 + $0x70] sm:$0xf]
  %v79 = vld [vmem:[%s1 + $0x74] sm:$0xf]
  %v80 = vld [vmem:[%s1 + $0x78] sm:$0xf]
  %v81 = vld [vmem:[%s1 + $0x7c] sm:$0xf]
  %v90 = vunpack.c.l.b16 %v42
  %v91 = vunpack.c.h.b16 %v42
  %v92 = vunpack.c.l.b16 %v43
  %v93 = vunpack.c.h.b16 %v43
  %v94 = vunpack.c.l.b16 %v44
  %v95 = vunpack.c.h.b16 %v44
  %v96 = vunpack.c.l.b16 %v45
  %v97 = vunpack.c.h.b16 %v45
  %v98 = vunpack.c.l.b16 %v46
  %v99 = vunpack.c.h.b16 %v46
  %v100 = vunpack.c.l.b16 %v47
  %v101 = vunpack.c.h.b16 %v47
  %v102 = vunpack.c.l.b16 %v48
  %v103 = vunpack.c.h.b16 %v48
  %v104 = vunpack.c.l.b16 %v49
  %v105 = vunpack.c.h.b16 %v49
  %v106 = vpack.c.b16 %v92, %v90
  %v107 = vpack.c.b16 %v93, %v91
  %v108 = vpack.c.b16 %v96, %v94
  %v109 = vpack.c.b16 %v97, %v95
  %v110 = vpack.c.b16 %v100, %v98
  %v111 = vpack.c.b16 %v101, %v99
  %v112 = vpack.c.b16 %v104, %v102
  %v113 = vpack.c.b16 %v105, %v103
  %v154 = vunpack.c.l.b16 %v50
  %v155 = vunpack.c.l.b16 %v51
  %v156 = vunpack.c.l.b16 %v52
  %v157 = vunpack.c.l.b16 %v53
  %v158 = vunpack.c.l.b16 %v54
  %v159 = vunpack.c.l.b16 %v55
  %v160 = vunpack.c.l.b16 %v56
  %v161 = vunpack.c.l.b16 %v57
  %v162 = vunpack.c.l.b16 %v58
  %v163 = vunpack.c.l.b16 %v59
  %v164 = vunpack.c.l.b16 %v60
  %v165 = vunpack.c.l.b16 %v61
  %v166 = vunpack.c.l.b16 %v62
  %v167 = vunpack.c.l.b16 %v63
  %v168 = vunpack.c.l.b16 %v64
  %v169 = vunpack.c.l.b16 %v65
  %v170 = vunpack.c.l.b16 %v66
  %v171 = vunpack.c.l.b16 %v67
  %v172 = vunpack.c.l.b16 %v68
  %v173 = vunpack.c.l.b16 %v69
  %v174 = vunpack.c.l.b16 %v70
  %v175 = vunpack.c.l.b16 %v71
  %v176 = vunpack.c.l.b16 %v72
  %v177 = vunpack.c.l.b16 %v73
  %v178 = vunpack.c.l.b16 %v74
  %v179 = vunpack.c.l.b16 %v75
  %v180 = vunpack.c.l.b16 %v76
  %v181 = vunpack.c.l.b16 %v77
  %v182 = vunpack.c.l.b16 %v78
  %v183 = vunpack.c.l.b16 %v79
  %v184 = vunpack.c.l.b16 %v80
  %v185 = vunpack.c.l.b16 %v81
  %v186 = vpack.c.b16 %v155, %v154
  %v187 = vpack.c.b16 %v157, %v156
  %v188 = vpack.c.b16 %v159, %v158
  %v189 = vpack.c.b16 %v161, %v160
  %v190 = vpack.c.b16 %v163, %v162
  %v191 = vpack.c.b16 %v165, %v164
  %v192 = vpack.c.b16 %v167, %v166
  %v193 = vpack.c.b16 %v169, %v168
  %v194 = vpack.c.b16 %v171, %v170
  %v195 = vpack.c.b16 %v173, %v172
  %v196 = vpack.c.b16 %v175, %v174
  %v197 = vpack.c.b16 %v177, %v176
  %v198 = vpack.c.b16 %v179, %v178
  %v199 = vpack.c.b16 %v181, %v180
  %v200 = vpack.c.b16 %v183, %v182
  %v201 = vpack.c.b16 %v185, %v184
  %218 = vmatprep.subr.bf16.mxu0 0
  %219 = vmatpush1.bf16.msra.mxu0 %v186
  %220 = vmatprep.subr.bf16.mxu0 0
  %221 = vmatpush1.bf16.msra.mxu0 %v187
  %222 = vmatprep.subr.bf16.mxu0 0
  %223 = vmatpush1.bf16.msra.mxu0 %v188
  %224 = vmatprep.subr.bf16.mxu0 0
  %225 = vmatpush1.bf16.msra.mxu0 %v189
  %226 = vmatprep.subr.bf16.mxu0 0
  %227 = vmatpush1.bf16.msra.mxu0 %v190
  %228 = vmatprep.subr.bf16.mxu0 0
  %229 = vmatpush1.bf16.msra.mxu0 %v191
  %230 = vmatprep.subr.bf16.mxu0 0
  %231 = vmatpush1.bf16.msra.mxu0 %v192
  %232 = vmatprep.subr.bf16.mxu0 0
  %233 = vmatpush1.bf16.msra.mxu0 %v193
  %234 = vmatprep.subr.bf16.mxu0 0
  %235 = vmatpush1.bf16.msra.mxu0 %v194
  %236 = vmatprep.subr.bf16.mxu0 0
  %237 = vmatpush1.bf16.msra.mxu0 %v195
  %238 = vmatprep.subr.bf16.mxu0 0
  %239 = vmatpush1.bf16.msra.mxu0 %v196
  %240 = vmatprep.subr.bf16.mxu0 0
  %241 = vmatpush1.bf16.msra.mxu0 %v197
  %242 = vmatprep.subr.bf16.mxu0 0
  %243 = vmatpush1.bf16.msra.mxu0 %v198
  %244 = vmatprep.subr.bf16.mxu0 0
  %245 = vmatpush1.bf16.msra.mxu0 %v199
  %246 = vmatprep.subr.bf16.mxu0 0
  %247 = vmatpush1.bf16.msra.mxu0 %v200
  %248 = vmatprep.subr.bf16.mxu0 0
  %249 = vmatpush1.bf16.msra.mxu0 %v201
  %250 = vmatprep.mubr.bf16.mxu0 %v107
  %251 = vmatmul.mubr.bf16.gmra.mrb[0].mxu0 %v106
  %v252 = vpop.f32.mrb[0].mxu0
  %v253 = vadd.f32 0.0, %v252
  %v254 = vpop.f32.mrb[0].mxu0
  %v255 = vpop.f32.mrb[0].mxu0
  %v256 = vadd.f32 0.0, %v255
  %v257 = vpop.f32.mrb[0].mxu0
  %258 = vmatprep.mubr.bf16.mxu0 %v109
  %259 = vmatmul.mubr.bf16.gmra.mrb[0].mxu0 %v108
  %v260 = vpop.f32.mrb[0].mxu0
  %v261 = vadd.f32 0.0, %v260
  %v262 = vpop.f32.mrb[0].mxu0
  %v263 = vpop.f32.mrb[0].mxu0
  %v264 = vadd.f32 0.0, %v263
  %v265 = vpop.f32.mrb[0].mxu0
  %266 = vmatprep.mubr.bf16.mxu0 %v111
  %267 = vmatmul.mubr.bf16.gmra.mrb[0].mxu0 %v110
  %v268 = vpop.f32.mrb[0].mxu0
  %v269 = vadd.f32 0.0, %v268
  %v270 = vpop.f32.mrb[0].mxu0
  %v271 = vpop.f32.mrb[0].mxu0
  %v272 = vadd.f32 0.0, %v271
  %v273 = vpop.f32.mrb[0].mxu0
  %274 = vmatprep.mubr.bf16.mxu0 %v113
  %275 = vmatmul.mubr.bf16.gmra.mrb[0].mxu0 %v112
  %v276 = vpop.f32.mrb[0].mxu0
  %v277 = vadd.f32 0.0, %v276
  %v278 = vpop.f32.mrb[0].mxu0
  %v279 = vpop.f32.mrb[0].mxu0
  %v280 = vadd.f32 0.0, %v279
  %v281 = vpop.f32.mrb[0].mxu0
  %282 = vdwg.mxu0
  %v283 = vadd.f32 %v34, %v253
  %v284 = vadd.f32 %v35, %v256
  %v285 = vadd.f32 %v36, %v261
  %v286 = vadd.f32 %v37, %v264
  %v287 = vadd.f32 %v38, %v269
  %v288 = vadd.f32 %v39, %v272
  %v289 = vadd.f32 %v40, %v277
  %v290 = vadd.f32 %v41, %v280
  %291 = vst [vmem:[#allocation2] sm:$0xff] %v283
  %292 = vst [vmem:[#allocation2 + $0x8] sm:$0xff] %v284
  %293 = vst [vmem:[#allocation2 + $0x10] sm:$0xff] %v285
  %294 = vst [vmem:[#allocation2 + $0x18] sm:$0xff] %v286
  %295 = vst [vmem:[#allocation2 + $0x20] sm:$0xff] %v287
  %296 = vst [vmem:[#allocation2 + $0x28] sm:$0xff] %v288
  %297 = vst [vmem:[#allocation2 + $0x30] sm:$0xff] %v289
  %298 = vst [vmem:[#allocation2 + $0x38] sm:$0xff] %v290
  // Predicated region
  $region18: #{_forward_impl.7} parent=0 // pred_check
    %p299 = pneg %p15
  $region19: #{_forward_impl.7} parent=0 // pred_check_branch
    %301 = sbr.rel (%p299) target = $region21
  $region20: #{_forward_impl.7} parent=0 // pred_region
    %v302 = vld [vmem:[#allocation2] sm:$0xff]
    %v303 = vld [vmem:[#allocation2 + $0x8] sm:$0xff]
    %v304 = vld [vmem:[#allocation2 + $0x10] sm:$0xff]
    %v305 = vld [vmem:[#allocation2 + $0x18] sm:$0xff]
    %v306 = vld [vmem:[#allocation2 + $0x20] sm:$0xff]
    %v307 = vld [vmem:[#allocation2 + $0x28] sm:$0xff]
    %v308 = vld [vmem:[#allocation2 + $0x30] sm:$0xff]
    %v309 = vld [vmem:[#allocation2 + $0x38] sm:$0xff]
    %v310 = vpack.c.bf16 %v303, %v302
    %v311 = vpack.c.bf16 %v305, %v304
    %v312 = vpack.c.bf16 %v307, %v306
    %v313 = vpack.c.bf16 %v309, %v308
    %v318 = vunpack.c.l.b16 %v310
    %v319 = vunpack.c.h.b16 %v310
    %v320 = vunpack.c.l.b16 %v311
    %v321 = vunpack.c.h.b16 %v311
    %v322 = vunpack.c.l.b16 %v312
    %v323 = vunpack.c.h.b16 %v312
    %v324 = vunpack.c.l.b16 %v313
    %v325 = vunpack.c.h.b16 %v313
    %v326 = vpack.c.b16 %v318, %v318
    %v327 = vpack.c.b16 %v319, %v319
    %v328 = vpack.c.b16 %v320, %v320
    %v329 = vpack.c.b16 %v321, %v321
    %v330 = vpack.c.b16 %v322, %v322
    %v331 = vpack.c.b16 %v323, %v323
    %v332 = vpack.c.b16 %v324, %v324
    %v333 = vpack.c.b16 %v325, %v325
    %342 = vst [vmem:[%s3] sm:$0xf] %v326
    %343 = vst [vmem:[%s3 + $0x4] sm:$0xf] %v327
    %344 = vst [vmem:[%s3 + $0x8] sm:$0xf] %v328
    %345 = vst [vmem:[%s3 + $0xc] sm:$0xf] %v329
    %346 = vst [vmem:[%s3 + $0x10] sm:$0xf] %v330
    %347 = vst [vmem:[%s3 + $0x14] sm:$0xf] %v331
    %348 = vst [vmem:[%s3 + $0x18] sm:$0xf] %v332
    %349 = vst [vmem:[%s3 + $0x1c] sm:$0xf] %v333
  $region21: #{_forward_impl.7} parent=0 // pred_fallthru
    _
  // Predicated region
  $region22: #{_forward_impl.7} parent=0 // pred_check
    _
  $region23: #{_forward_impl.7} parent=0 // pred_check_branch
    %351 = sbr.rel (0) target = $region25
  $region24: #{_forward_impl.7} parent=0 // pred_region
    _
  $region25: #{_forward_impl.7} parent=0 // pred_fallthru
    _
  // Predicated region
  $region26: #{_forward_impl.7} parent=0 // pred_check
    _
  $region27: #{_forward_impl.7} parent=0 // pred_check_branch
    %353 = sbr.rel (0) target = $region29
  $region28: #{_forward_impl.7} parent=0 // pred_region
    _
  $region29: #{_forward_impl.7} parent=0 // pred_fallthru
    _

</llo_original>
